<compile_context>
chip_gen: v6e
topology: v6e:2x2x1
jax: 0.10.0
libtpu: 0.0.40
codegen_flags: <defaults>
</compile_context>

<pallas_src>
import functools

import jax
import jax.numpy as jnp
from jax.experimental import pallas as pl
from jax.experimental.pallas import tpu as pltpu


def _round_up(v: int, m: int) -> int:
    return (v + m - 1) // m * m


def _cdiv(a: int, b: int) -> int:
    return (a + b - 1) // b


def _segment_sum_kernel(batch_ref, x_ref, graph_ref, acc_ref, *,
                        n_nodes, tile_n, tiles_per_split, need_mask,
                        compute_dtype):
    inner = pl.program_id(1)

    # Zero the resident accumulator at the start of this core's node range.
    @pl.when(inner == 0)
    def _():
        acc_ref[...] = jnp.zeros_like(acc_ref)

    x = x_ref[...].astype(compute_dtype)     # (tile_n, D)
    b = batch_ref[...]                       # (1, tile_n) int32 graph ids

    if need_mask:
        # Ragged tail: zero rows past the real node count so OOB garbage
        # (possibly NaN bit patterns) cannot poison the MXU accumulator.
        split = pl.program_id(0)
        start = (split * tiles_per_split + inner) * tile_n
        row = jax.lax.broadcasted_iota(jnp.int32, x.shape, 0)
        x = jnp.where(row + start < n_nodes, x, jnp.zeros_like(x))

    g_pad = acc_ref.shape[0]
    # one-hot segment matrix (G_pad, tile_n): onehot[g, n] = (batch[n] == g).
    # Padded ids (-1) and ids >= num_graphs match nothing (silently dropped,
    # matching segment_sum with a fixed number of segments).
    gid = jax.lax.broadcasted_iota(jnp.int32, (g_pad, tile_n), 0)
    onehot = (gid == b).astype(compute_dtype)

    # graph[g, d] += sum_{n in tile : batch[n] == g} x[n, d]  (f32 accumulate).
    acc_ref[...] += jnp.dot(onehot, x, preferred_element_type=jnp.float32)

    # Write this core's partial once, after its last node-tile.
    @pl.when(inner == pl.num_programs(1) - 1)
    def _():
        graph_ref[...] = acc_ref[...].astype(graph_ref.dtype)


def identity_model_forward(x, batch, num_graphs, *, tile_n=None):
    """Pallas implementation of IdentityModel.forward.

    Returns {'node_embedding': [N, D], 'graph_embedding': [G, D]}.
    """
    N, D = x.shape
    itemsize = jnp.dtype(x.dtype).itemsize
    d_lane = _round_up(D, 128)                      # VMEM lane footprint only
    G_pad = _round_up(max(int(num_graphs), 1), 8)

    # Node-tile size: target ~2 MiB of x per grid step, multiple of 128.
    if tile_n is None:
        tile_n = (2 * 1024 * 1024) // max(d_lane * itemsize, 1)
        tile_n = max(256, min(tile_n, 8192))
    tile_n = _round_up(max(int(tile_n), 128), 128)
    tile_n = min(tile_n, _round_up(N, 128))

    num_tiles = _cdiv(N, tile_n)
    num_splits = 2 if num_tiles >= 2 else 1         # both TCs on v7x megacore
    tiles_per_split = _cdiv(num_tiles, num_splits)
    n_pad = num_splits * tiles_per_split * tile_n
    last_tile = num_tiles - 1

    # Only the tiny batch-id vector is padded; x streams from HBM as-is.
    b_p = jnp.full((1, n_pad), -1, dtype=jnp.int32).at[0, :N].set(
        batch.astype(jnp.int32))

    compute_dtype = (x.dtype if jnp.issubdtype(x.dtype, jnp.floating)
                     else jnp.float32)

    kernel = functools.partial(
        _segment_sum_kernel,
        n_nodes=N, tile_n=tile_n, tiles_per_split=tiles_per_split,
        need_mask=(n_pad != N), compute_dtype=compute_dtype)

    # Explicit VMEM budget (v7x only has 64 MiB physical VMEM).
    vmem_bytes = (
        2 * tile_n * d_lane * itemsize   # double-buffered x blocks
        + 2 * 8 * tile_n * 4             # double-buffered batch-id blocks
        + 2 * G_pad * d_lane * 4         # double-buffered f32 output block
        + G_pad * d_lane * 4             # resident accumulator scratch
        + G_pad * tile_n * 4             # one-hot temporary
        + tile_n * d_lane * 4            # masked / cast x temporary
    )
    vmem_limit = int(min(max(2 * vmem_bytes, 8 << 20), 48 << 20))

    def batch_map(c, i):
        return (0, c * tiles_per_split + i)

    def x_map(c, i):
        # Clamp fully-empty tiles (from the parallel split) onto the last real
        # tile so the DMA never starts past the end of x; the in-kernel row
        # mask zeroes their contribution.
        return (jnp.minimum(c * tiles_per_split + i, last_tile), 0)

    graph_partials = pl.pallas_call(
        kernel,
        out_shape=jax.ShapeDtypeStruct((num_splits, G_pad, D), jnp.float32),
        grid_spec=pltpu.PrefetchScalarGridSpec(
            num_scalar_prefetch=0,
            grid=(num_splits, tiles_per_split),
            in_specs=[
                pl.BlockSpec((1, tile_n), batch_map),   # batch ids
                pl.BlockSpec((tile_n, D), x_map),       # node feats (full D)
            ],
            out_specs=pl.BlockSpec((None, G_pad, D), lambda c, i: (c, 0, 0)),
            scratch_shapes=[pltpu.VMEM((G_pad, D), jnp.float32)],
        ),
        compiler_params=pltpu.CompilerParams(
            dimension_semantics=("parallel", "arbitrary"),
            vmem_limit_bytes=vmem_limit,
        ),
    )(b_p, x)

    if num_splits > 1:
        graph_f32 = graph_partials.sum(axis=0)
    else:
        graph_f32 = graph_partials[0]
    graph_emb = graph_f32[:num_graphs, :D].astype(x.dtype)

    # Identity passthrough: no kernel, no extra HBM traffic.
    return {"node_embedding": x, "graph_embedding": graph_emb}


if __name__ == "__main__":
    key = jax.random.PRNGKey(0)
    k1, k2 = jax.random.split(key)

    # Test 1: small synthetic "protein batch": 16 nodes, 32-dim feats, 2 graphs.
    N1, D1, G1 = 16, 32, 2
    x1 = jax.random.normal(k1, (N1, D1), dtype=jnp.float32)
    batch1 = jnp.concatenate(
        [jnp.zeros((10,), jnp.int32), jnp.ones((6,), jnp.int32)])
    out1 = identity_model_forward(x1, batch1, num_graphs=G1)
    jax.block_until_ready(out1)
    ref1 = jax.ops.segment_sum(x1, batch1, num_segments=G1)
    assert out1["node_embedding"].shape == (N1, D1)
    assert out1["graph_embedding"].shape == (G1, D1)
    assert jnp.allclose(out1["node_embedding"], x1, atol=1e-6)
    assert jnp.allclose(out1["graph_embedding"], ref1, atol=1e-5, rtol=1e-5)

    # Test 2: ragged multi-tile grid exercising the 2-way split + tail mask.
    N2, D2, G2 = 300, 48, 5
    x2 = jax.random.normal(k2, (N2, D2), dtype=jnp.float32)
    batch2 = jnp.sort(jax.random.randint(k1, (N2,), 0, G2)).astype(jnp.int32)
    out2 = identity_model_forward(x2, batch2, num_graphs=G2, tile_n=128)
    jax.block_until_ready(out2)
    ref2 = jax.ops.segment_sum(x2, batch2, num_segments=G2)
    assert out2["graph_embedding"].shape == (G2, D2)
    assert jnp.allclose(out2["node_embedding"], x2, atol=1e-6)
    assert jnp.allclose(out2["graph_embedding"], ref2, atol=1e-4, rtol=1e-4)

    print("KERNEL_OK")
</pallas_src>

<mosaic_0001>
module attributes {stable_mosaic.version = 11 : i64} {
  func.func @_segment_sum_kernel(%arg0: i32, %arg1: i32, %arg2: memref<1x128xi32, #tpu.memory_space<vmem>>, %arg3: memref<128x32xf32, #tpu.memory_space<vmem>>, %arg4: memref<1x8x32xf32, #tpu.memory_space<vmem>>, %arg5: memref<8x32xf32, #tpu.memory_space<vmem>>) attributes {dimension_semantics = [#tpu.dimension_semantics<parallel>, #tpu.dimension_semantics<arbitrary>], iteration_bounds = array<i64: 1, 1>, scalar_prefetch = 0 : i64, scratch_operands = 1 : i64, tpu.core_type = #tpu.core_type<tc>, window_params = [{transform_indices = @transform_0, window_bounds = array<i64: 1, 128>}, {transform_indices = @transform_1, window_bounds = array<i64: 128, 32>}, {transform_indices = @transform_2, window_bounds = array<i64: 1, 8, 32>}]} {
    %c0_i32 = arith.constant 0 : i32
    %0 = arith.cmpi eq, %arg1, %c0_i32 : i32
    %1 = arith.extui %0 : i1 to i32
    %c0_i32_0 = arith.constant 0 : i32
    %2 = arith.cmpi ne, %1, %c0_i32_0 : i32
    scf.if %2 {
      %cst_11 = arith.constant 0.000000e+00 : f32
      %27 = vector.broadcast %cst_11 : f32 to vector<8x32xf32>
      %c0_12 = arith.constant 0 : index
      %c0_13 = arith.constant 0 : index
      %28 = vector.load %arg5[%c0_12, %c0_13] : memref<8x32xf32, #tpu.memory_space<vmem>>, vector<8x32xf32>
      tpu.vector_store %arg5[%c0_12, %c0_13], %27 {strides = array<i32>} : memref<8x32xf32, #tpu.memory_space<vmem>>, vector<8x32xf32>,
    } else {
    }
    %c0 = arith.constant 0 : index
    %c0_1 = arith.constant 0 : index
    %3 = vector.load %arg3[%c0, %c0_1] : memref<128x32xf32, #tpu.memory_space<vmem>>, vector<128x32xf32>
    %c0_2 = arith.constant 0 : index
    %c0_3 = arith.constant 0 : index
    %4 = vector.load %arg2[%c0_2, %c0_3] : memref<1x128xi32, #tpu.memory_space<vmem>>, vector<1x128xi32>
    %c1_i32 = arith.constant 1 : i32
    %5 = arith.muli %arg0, %c1_i32 : i32
    %6 = arith.addi %5, %arg1 : i32
    %c128_i32 = arith.constant 128 : i32
    %7 = arith.muli %6, %c128_i32 : i32
    %8 = tpu.iota {dimensions = array<i32: 0>} : vector<128x32xi32>
    %9 = vector.broadcast %7 : i32 to vector<128x32xi32>
    %10 = arith.addi %8, %9 : vector<128x32xi32>
    %c16_i32 = arith.constant 16 : i32
    %11 = vector.broadcast %c16_i32 : i32 to vector<128x32xi32>
    %12 = arith.cmpi slt, %10, %11 : vector<128x32xi32>
    %cst = arith.constant 0.000000e+00 : f32
    %13 = vector.broadcast %cst : f32 to vector<128x32xf32>
    %14 = arith.select %12, %3, %13 : vector<128x32xi1>, vector<128x32xf32>
    %15 = tpu.iota {dimensions = array<i32: 0>} : vector<8x128xi32>
    %16 = vector.broadcast %4 : vector<1x128xi32> to vector<8x128xi32>
    %17 = arith.cmpi eq, %15, %16 : vector<8x128xi32>
    %18 = arith.extui %17 : vector<8x128xi1> to vector<8x128xi32>
    %19 = arith.sitofp %18 : vector<8x128xi32> to vector<8x128xf32>
    %c0_4 = arith.constant 0 : index
    %c0_5 = arith.constant 0 : index
    %20 = vector.load %arg5[%c0_4, %c0_5] : memref<8x32xf32, #tpu.memory_space<vmem>>, vector<8x32xf32>
    %cst_6 = arith.constant dense<0.000000e+00> : vector<8x32xf32>
    %21 = tpu.matmul %19, %14, %cst_6 {dimension_numbers = #tpu.dot_dimension_numbers<[1], [0], [0], [1], [0, 0, 1, 1], [], []>} : vector<8x128xf32>, vector<128x32xf32>, vector<8x32xf32> -> vector<8x32xf32>
    %22 = arith.addf %20, %21 : vector<8x32xf32>
    %c0_7 = arith.constant 0 : index
    %c0_8 = arith.constant 0 : index
    %23 = vector.load %arg5[%c0_7, %c0_8] : memref<8x32xf32, #tpu.memory_space<vmem>>, vector<8x32xf32>
    tpu.vector_store %arg5[%c0_7, %c0_8], %22 {strides = array<i32>} : memref<8x32xf32, #tpu.memory_space<vmem>>, vector<8x32xf32>,
    %c0_i32_9 = arith.constant 0 : i32
    %24 = arith.cmpi eq, %arg1, %c0_i32_9 : i32
    %25 = arith.extui %24 : i1 to i32
    %c0_i32_10 = arith.constant 0 : i32
    %26 = arith.cmpi ne, %25, %c0_i32_10 : i32
    scf.if %26 {
      %c0_11 = arith.constant 0 : index
      %c0_12 = arith.constant 0 : index
      %27 = vector.load %arg5[%c0_11, %c0_12] : memref<8x32xf32, #tpu.memory_space<vmem>>, vector<8x32xf32>
      %c0_13 = arith.constant 0 : index
      %c0_14 = arith.constant 0 : index
      %c0_15 = arith.constant 0 : index
      %28 = vector.load %arg4[%c0_13, %c0_14, %c0_15] : memref<1x8x32xf32, #tpu.memory_space<vmem>>, vector<1x8x32xf32>
      %29 = vector.shape_cast %28 : vector<1x8x32xf32> to vector<8x32xf32>
      %30 = vector.shape_cast %27 : vector<8x32xf32> to vector<1x8x32xf32>
      tpu.vector_store %arg4[%c0_13, %c0_14, %c0_15], %30 {strides = array<i32>} : memref<1x8x32xf32, #tpu.memory_space<vmem>>, vector<1x8x32xf32>,
    } else {
    }
    return
  }
  func.func @transform_0(%arg0: i32, %arg1: i32) -> (i32, i32) {
    %c1_i32 = arith.constant 1 : i32
    %0 = arith.muli %arg0, %c1_i32 : i32
    %1 = arith.addi %0, %arg1 : i32
    %c0_i32 = arith.constant 0 : i32
    %c0_i32_0 = arith.constant 0 : i32
    return %c0_i32, %1 : i32, i32
  }
  func.func @transform_1(%arg0: i32, %arg1: i32) -> (i32, i32) {
    %c1_i32 = arith.constant 1 : i32
    %0 = arith.muli %arg0, %c1_i32 : i32
    %1 = arith.addi %0, %arg1 : i32
    %c0_i32 = arith.constant 0 : i32
    %2 = arith.minsi %1, %c0_i32 : i32
    %c0_i32_0 = arith.constant 0 : i32
    %c0_i32_1 = arith.constant 0 : i32
    return %2, %c0_i32_0 : i32, i32
  }
  func.func @transform_2(%arg0: i32, %arg1: i32) -> (i32, i32, i32) {
    %c0_i32 = arith.constant 0 : i32
    %c0_i32_0 = arith.constant 0 : i32
    %c0_i32_1 = arith.constant 0 : i32
    return %arg0, %c0_i32, %c0_i32_0 : i32, i32, i32
  }
}

</mosaic_0001>

<llo_original>
// kernel: tpu_custom_call.1
$region0: #{tpu_custom_call.1}
  #allocation0 [shape = 'u32[]', space=smem, size = 0x4, offset = 0x4, fixed_abs, tag = 'smem constant byte address 0x4 - core index']
  #allocation1 [shape = 'u32[144,128]{1,0:T(1,128)}', space=vmem, size = 0x12000, scoped, tag = 'internal scratch']
  #allocation2 [shape = 'f32[8,32]{1,0:T(8,128)}', space=vmem, size = 0x1000, scoped, tag = 'scratch operand']
  %s0 = inlined_call_operand.hbm [shape: s32[1,128], index: 0, kind: input, shape index: {}]
  %s1 = inlined_call_operand.hbm [shape: f32[16,32], index: 1, kind: input, shape index: {}]
  %s2 = inlined_call_operand.hbm [shape: f32[1,8,32], index: 2, kind: output, shape index: {}]
  %s3 = sld [smem:[#allocation0]]
  $region34: #{tpu_custom_call.1} parent=0
    _
  %s5 = ssub.s32 1, %s3
  %s6 = scalar_select 0, %s5, %s3
  $region1: #{tpu_custom_call.1} parent=0
    #allocation3 [shape = 'u8[512]{0}', space=vmem, size = 0x400, scoped, tag = 'input window, operand 0, single buffered']
    #allocation4 [shape = 's32[1]{0}', space=sflag, size = 0x4, scoped, tag = 'scoped memory for tpu_custom_call.1']
    #allocation5 [shape = 's32[1]{0}', space=sflag, size = 0x4, scoped, tag = 'scoped memory for tpu_custom_call.1']
    #allocation6 [shape = 'u8[65536]{0}', space=vmem, size = 0x10000, scoped, tag = 'input window, operand 1, single buffered']
    #allocation7 [shape = 's32[1]{0}', space=sflag, size = 0x4, scoped, tag = 'scoped memory for tpu_custom_call.1']
    #allocation8 [shape = 'u8[4096]{0}', space=vmem, size = 0x1000, scoped, tag = 'output window, operand 0, single buffered']
    %7 = vsyncpa [#allocation4], 0
    %8 = vsyncpa [#allocation7], 0
    %9 = vsyncpa [#allocation5], 0
    // Predicated region
    $region2: #{tpu_custom_call.1} parent=1 // pred_check
      _
    $region3: #{tpu_custom_call.1} parent=1 // pred_check_branch
      %11 = sbr.rel (0) target = $region5
    $region4: #{tpu_custom_call.1} parent=1 // pred_region
      %s12 = sadd.s32 0, 0
      %s14 = ssub.s32 16, 16
      %15 = vsyncadd [#allocation4], %s14
      %s16 = smul.addr %s12, 16
      %s17 = scalar_lea.hbm %s0, %s16
      %s19 = sshll.u32 [#allocation3], 4
      %s20 = int_to_ptr.vmem [resolvable:$true] %s19
      %22 = dma.hbm_to_vmem [thread:$0]  %s17, 16, %s20, [#allocation4]
    $region5: #{tpu_custom_call.1} parent=1 // pred_fallthru
      _
    // Predicated region
    $region6: #{tpu_custom_call.1} parent=1 // pred_check
      _
    $region7: #{tpu_custom_call.1} parent=1 // pred_check_branch
      %24 = sbr.rel (0) target = $region9
    $region8: #{tpu_custom_call.1} parent=1 // pred_region
      %s25 = sadd.s32 0, 0
      %p26 = scmp.lt.s32.totalorder %s25, 0
      %s27 = scalar_select %p26, %s25, 0
      %s28 = smul.u32 16, %s27
      %s29 = ssub.s32 2, %s28
      %s30 = smul.u32 128, %s29
      %s32 = ssub.s32 2048, %s30
      %33 = vsyncadd [#allocation7], %s32
      %p34 = scmp.ne.s32.totalorder 0, %s30
      %s35 = smul.addr %s28, 128
      %s36 = scalar_lea.hbm %s1, %s35
      %s37 = smul.u32 8, %s29
      %s38 = sshll.u32 [#allocation6], 4
      %s39 = int_to_ptr.vmem [resolvable:$true] %s38
      %s40 = sshll.u32 %s37, 4
      %44 = dma.hbm_to_vmem [thread:$0]  (%p34), %s36, %s40, %s39, [#allocation7], 128, 128, 8
    $region9: #{tpu_custom_call.1} parent=1 // pred_fallthru
      _
    // Predicated region
    $region10: #{tpu_custom_call.1} parent=1 // pred_check
      _
    $region11: #{tpu_custom_call.1} parent=1 // pred_check_branch
      %46 = sbr.rel (0) target = $region13
    $region12: #{tpu_custom_call.1} parent=1 // pred_region
      %47 = dma.done [#allocation4], 16
    $region13: #{tpu_custom_call.1} parent=1 // pred_fallthru
      _
    // Predicated region
    $region14: #{tpu_custom_call.1} parent=1 // pred_check
      _
    $region15: #{tpu_custom_call.1} parent=1 // pred_check_branch
      %49 = sbr.rel (0) target = $region17
    $region16: #{tpu_custom_call.1} parent=1 // pred_region
      %50 = dma.done [#allocation7], 2048
    $region17: #{tpu_custom_call.1} parent=1 // pred_fallthru
      _
    %s51 = sadd.s32 0, 0
    %s52 = sadd.s32 0, 0
    %p53 = scmp.lt.s32.totalorder %s52, 0
    %s54 = scalar_select %p53, %s52, 0
    %s55 = smul.u32 16, %s54
    %s56 = ssub.s32 2, %s55
    %s57 = smul.u32 128, %s56
    %p58 = scmp.eq.s32.totalorder 0, 0
    // Predicated region
    $region18: #{tpu_custom_call.1} parent=1 // pred_check
      %p59 = pneg %p58
    $region19: #{tpu_custom_call.1} parent=1 // pred_check_branch
      %61 = sbr.rel (%p59) target = $region21
    $region20: #{tpu_custom_call.1} parent=1 // pred_region
      %vm62 = vcmask 261120
      %63 = vst.msk [vmem:[#allocation2] sm:$0xff] %vm62, 0.0
    $region21: #{tpu_custom_call.1} parent=1 // pred_fallthru
      _
    %v64 = vld [vmem:[#allocation6] sm:$0xff]
    %v65 = vld [vmem:[#allocation6 + $0x8] sm:$0xff]
    %v66 = vld [vmem:[#allocation6 + $0x10] sm:$0xff]
    %v67 = vld [vmem:[#allocation6 + $0x18] sm:$0xff]
    %v68 = vld [vmem:[#allocation6 + $0x20] sm:$0xff]
    %v69 = vld [vmem:[#allocation6 + $0x28] sm:$0xff]
    %v70 = vld [vmem:[#allocation6 + $0x30] sm:$0xff]
    %v71 = vld [vmem:[#allocation6 + $0x38] sm:$0xff]
    %v72 = vld [vmem:[#allocation6 + $0x40] sm:$0xff]
    %v73 = vld [vmem:[#allocation6 + $0x48] sm:$0xff]
    %v74 = vld [vmem:[#allocation6 + $0x50] sm:$0xff]
    %v75 = vld [vmem:[#allocation6 + $0x58] sm:$0xff]
    %v76 = vld [vmem:[#allocation6 + $0x60] sm:$0xff]
    %v77 = vld [vmem:[#allocation6 + $0x68] sm:$0xff]
    %v78 = vld [vmem:[#allocation6 + $0x70] sm:$0xff]
    %v79 = vld [vmem:[#allocation6 + $0x78] sm:$0xff]
    %v80 = vld [vmem:[#allocation3] sm:$0x1]
    %s81 = sadd.s32 0, 0
    %s82 = smul.u32 %s81, 128
    %v83 = vlaneseq
    %v84 = vshrl.u32 %v83, 7
    %v85 = vadd.s32 %v84, 8
    %v86 = vadd.s32 %v84, 16
    %v87 = vadd.s32 %v84, 24
    %v88 = vadd.s32 %v84, 32
    %v89 = vadd.s32 %v84, 40
    %v90 = vadd.s32 %v84, 48
    %v91 = vadd.s32 %v84, 56
    %v92 = vadd.s32 %v84, 64
    %v93 = vadd.s32 %v84, 72
    %v94 = vadd.s32 %v84, 80
    %v95 = vadd.s32 %v84, 88
    %v96 = vadd.s32 %v84, 96
    %v97 = vadd.s32 %v84, 104
    %v98 = vadd.s32 %v84, 112
    %v99 = vadd.s32 %v84, 120
    %v100 = vstv %s82
    %v101 = vadd.s32 %v84, %v100
    %v102 = vadd.s32 %v85, %v100
    %v103 = vadd.s32 %v86, %v100
    %v104 = vadd.s32 %v87, %v100
    %v105 = vadd.s32 %v88, %v100
    %v106 = vadd.s32 %v89, %v100
    %v107 = vadd.s32 %v90, %v100
    %v108 = vadd.s32 %v91, %v100
    %v109 = vadd.s32 %v92, %v100
    %v110 = vadd.s32 %v93, %v100
    %v111 = vadd.s32 %v94, %v100
    %v112 = vadd.s32 %v95, %v100
    %v113 = vadd.s32 %v96, %v100
    %v114 = vadd.s32 %v97, %v100
    %v115 = vadd.s32 %v98, %v100
    %v116 = vadd.s32 %v99, %v100
    %vm117 = vcmp.lt.s32.totalorder %v101, 16
    %vm118 = vcmp.lt.s32.totalorder %v102, 16
    %vm119 = vcmp.lt.s32.totalorder %v103, 16
    %vm120 = vcmp.lt.s32.totalorder %v104, 16
    %vm121 = vcmp.lt.s32.totalorder %v105, 16
    %vm122 = vcmp.lt.s32.totalorder %v106, 16
    %vm123 = vcmp.lt.s32.totalorder %v107, 16
    %vm124 = vcmp.lt.s32.totalorder %v108, 16
    %vm125 = vcmp.lt.s32.totalorder %v109, 16
    %vm126 = vcmp.lt.s32.totalorder %v110, 16
    %vm127 = vcmp.lt.s32.totalorder %v111, 16
    %vm128 = vcmp.lt.s32.totalorder %v112, 16
    %vm129 = vcmp.lt.s32.totalorder %v113, 16
    %vm130 = vcmp.lt.s32.totalorder %v114, 16
    %vm131 = vcmp.lt.s32.totalorder %v115, 16
    %vm132 = vcmp.lt.s32.totalorder %v116, 16
    %v133 = vsel %vm117, %v64, 0.0
    %v134 = vsel %vm118, %v65, 0.0
    %v135 = vsel %vm119, %v66, 0.0
    %v136 = vsel %vm120, %v67, 0.0
    %v137 = vsel %vm121, %v68, 0.0
    %v138 = vsel %vm122, %v69, 0.0
    %v139 = vsel %vm123, %v70, 0.0
    %v140 = vsel %vm124, %v71, 0.0
    %v141 = vsel %vm125, %v72, 0.0
    %v142 = vsel %vm126, %v73, 0.0
    %v143 = vsel %vm127, %v74, 0.0
    %v144 = vsel %vm128, %v75, 0.0
    %v145 = vsel %vm129, %v76, 0.0
    %v146 = vsel %vm130, %v77, 0.0
    %v147 = vsel %vm131, %v78, 0.0
    %v148 = vsel %vm132, %v79, 0.0
    %v149 = vlaneseq
    %v150 = vshrl.u32 %v149, 7
    %v151 = vsub.s32 0, %v150
    %v152 = vrot.slane %v80, %v151
    %vm153 = vcmp.eq.s32.totalorder %v84, %v152
    %v154 = vsel %vm153, 1, 0
    %v155 = vcvt.s32.f32 %v154
    %v156 = vld [vmem:[#allocation2] sm:$0xff]
    %157 = vmatprep.subr.mxu0 0.0
    %158 = vmatpush1.msra.mxu0 %v148
    %159 = vmatprep.subr.mxu0 0.0
    %160 = vmatpush1.msra.mxu0 %v147
    %161 = vmatprep.subr.mxu0 0.0
    %162 = vmatpush1.msra.mxu0 %v146
    %163 = vmatprep.subr.mxu0 0.0
    %164 = vmatpush1.msra.mxu0 %v145
    %165 = vmatprep.subr.mxu0 0.0
    %166 = vmatpush1.msra.mxu0 %v144
    %167 = vmatprep.subr.mxu0 0.0
    %168 = vmatpush1.msra.mxu0 %v143
    %169 = vmatprep.subr.mxu0 0.0
    %170 = vmatpush1.msra.mxu0 %v142
    %171 = vmatprep.subr.mxu0 0.0
    %172 = vmatpush1.msra.mxu0 %v141
    %173 = vmatprep.subr.mxu0 0.0
    %174 = vmatpush1.msra.mxu0 %v140
    %175 = vmatprep.subr.mxu0 0.0
    %176 = vmatpush1.msra.mxu0 %v139
    %177 = vmatprep.subr.mxu0 0.0
    %178 = vmatpush1.msra.mxu0 %v138
    %179 = vmatprep.subr.mxu0 0.0
    %180 = vmatpush1.msra.mxu0 %v137
    %181 = vmatprep.subr.mxu0 0.0
    %182 = vmatpush1.msra.mxu0 %v136
    %183 = vmatprep.subr.mxu0 0.0
    %184 = vmatpush1.msra.mxu0 %v135
    %185 = vmatprep.subr.mxu0 0.0
    %186 = vmatpush1.msra.mxu0 %v134
    %187 = vmatprep.subr.mxu0 0.0
    %188 = vmatpush1.msra.mxu0 %v133
    %189 = vmatprep.subr.mxu0 0.0
    %190 = vmatpush2.msra.mxu0 0.0
    %191 = vmatprep.subr.mxu0 0.0
    %192 = vmatpush2.msra.mxu0 0.0
    %193 = vmatprep.subr.mxu0 0.0
    %194 = vmatpush2.msra.mxu0 0.0
    %195 = vmatprep.subr.mxu0 0.0
    %196 = vmatpush2.msra.mxu0 0.0
    %197 = vmatprep.subr.mxu0 0.0
    %198 = vmatpush2.msra.mxu0 0.0
    %199 = vmatprep.subr.mxu0 0.0
    %200 = vmatpush2.msra.mxu0 0.0
    %201 = vmatprep.subr.mxu0 0.0
    %202 = vmatpush2.msra.mxu0 0.0
    %203 = vmatprep.subr.mxu0 0.0
    %204 = vmatpush2.msra.mxu0 0.0
    %205 = vmatprep.subr.mxu0 0.0
    %206 = vmatpush2.msra.mxu0 0.0
    %207 = vmatprep.subr.mxu0 0.0
    %208 = vmatpush2.msra.mxu0 0.0
    %209 = vmatprep.subr.mxu0 0.0
    %210 = vmatpush2.msra.mxu0 0.0
    %211 = vmatprep.subr.mxu0 0.0
    %212 = vmatpush2.msra.mxu0 0.0
    %213 = vmatprep.subr.mxu0 0.0
    %214 = vmatpush2.msra.mxu0 0.0
    %215 = vmatprep.subr.mxu0 0.0
    %216 = vmatpush2.msra.mxu0 0.0
    %217 = vmatprep.subr.mxu0 0.0
    %218 = vmatpush2.msra.mxu0 0.0
    %219 = vmatprep.subr.mxu0 0.0
    %220 = vmatpush2.msra.mxu0 0.0
    %221 = vmatprep.mubr.f32.mxu0 0.0
    %222 = vmatmul.mubr.f32.gmra.mxu0 %v155
    %v223 = vpop.f32.mrf.mxu0
    %v224 = vadd.f32 0.0, %v223
    %v225 = vpop.f32.mrf.mxu0
    %226 = vdwg.mxu0
    %v227 = vadd.f32 %v156, %v224
    %vm228 = vcmask 261120
    %229 = vst.msk [vmem:[#allocation2] sm:$0xff] %vm228, %v227
    // Predicated region
    $region22: #{tpu_custom_call.1} parent=1 // pred_check
      %p230 = pneg %p58
    $region23: #{tpu_custom_call.1} parent=1 // pred_check_branch
      %232 = sbr.rel (%p230) target = $region25
    $region24: #{tpu_custom_call.1} parent=1 // pred_region
      %v233 = vld [vmem:[#allocation2] sm:$0xff]
      %234 = vst.msk [vmem:[#allocation8] sm:$0xff] %vm228, %v233
    $region25: #{tpu_custom_call.1} parent=1 // pred_fallthru
      _
    // Predicated region
    $region26: #{tpu_custom_call.1} parent=1 // pred_check
      _
    $region27: #{tpu_custom_call.1} parent=1 // pred_check_branch
      %236 = sbr.rel (0) target = $region29
    $region28: #{tpu_custom_call.1} parent=1 // pred_region
      %s238 = ssub.s32 128, 128
      %239 = vsyncadd [#allocation5], %s238
      %s241 = sshll.u32 [#allocation8], 4
      %s242 = int_to_ptr.vmem [resolvable:$true] %s241
      %244 = dma.vmem_to_hbm [thread:$0]  %s242, 128, %s2, [#allocation5]
    $region29: #{tpu_custom_call.1} parent=1 // pred_fallthru
      _
    // Predicated region
    $region30: #{tpu_custom_call.1} parent=1 // pred_check
      _
    $region31: #{tpu_custom_call.1} parent=1 // pred_check_branch
      %246 = sbr.rel (0) target = $region33
    $region32: #{tpu_custom_call.1} parent=1 // pred_region
      %247 = dma.done [#allocation5], 128
    $region33: #{tpu_custom_call.1} parent=1 // pred_fallthru
      _
    %248 = vsyncpa [#allocation4], 1
    %249 = vsyncpa [#allocation7], 1
    %250 = vsyncpa [#allocation5], 1

</llo_original>
